<compile_context>
chip_gen: v7x
topology: tpu7x:2x2x1
jax: 0.10.0
libtpu: 0.0.40
codegen_flags: <defaults>
</compile_context>

<pallas_src>
import functools

import jax
import jax.numpy as jnp
from jax.experimental import pallas as pl
from jax.experimental.pallas import tpu as pltpu

HIDDEN1 = 60
HIDDEN2 = 45
PAD = 128          # lane-dense padded width for hidden / output dims
MAX_TILE_B = 512   # batch rows per grid step (85%+ of HBM roofline territory)


def _round_up(n, m):
    return ((n + m - 1) // m) * m


def _actor_kernel(bounds_ref, x_ref, w_ref, b_ref, o_ref, *, obs_pad):
    """Fused 4-layer MLP on one (tile_b, obs_pad) batch tile.

    w_ref: packed (obs_pad + 3*PAD, PAD) weight slab, row-major:
        rows [0, obs_pad)               -> W1 (obs_pad, PAD)
        rows [obs_pad, obs_pad+PAD)     -> W2 (PAD, PAD)
        rows [.., obs_pad+2*PAD)        -> W3 (PAD, PAD)
        rows [.., obs_pad+3*PAD)        -> W4 (PAD, PAD)
    b_ref: (8, PAD) bias slab, row i = bias of layer i+1 (rows 4..7 unused).
    bounds_ref: SMEM (1, 2) = [min_val, max_val] for the final Hardtanh.
    """
    lo = bounds_ref[0, 0]
    hi = bounds_ref[0, 1]

    x = x_ref[...]
    w1 = w_ref[0:obs_pad, :]
    w2 = w_ref[obs_pad:obs_pad + PAD, :]
    w3 = w_ref[obs_pad + PAD:obs_pad + 2 * PAD, :]
    w4 = w_ref[obs_pad + 2 * PAD:obs_pad + 3 * PAD, :]

    # Layer 1: Linear + ReLU
    h = jnp.dot(x, w1, preferred_element_type=jnp.float32)
    h = jnp.maximum(h + b_ref[0:1, :], 0.0)
    # Layer 2: Linear + ReLU
    h = jnp.dot(h, w2, preferred_element_type=jnp.float32)
    h = jnp.maximum(h + b_ref[1:2, :], 0.0)
    # Layer 3: Linear + ReLU
    h = jnp.dot(h, w3, preferred_element_type=jnp.float32)
    h = jnp.maximum(h + b_ref[2:3, :], 0.0)
    # Layer 4: Linear + Hardtanh(min_val, max_val)
    y = jnp.dot(h, w4, preferred_element_type=jnp.float32)
    y = y + b_ref[3:4, :]
    o_ref[...] = jnp.clip(y, lo, hi).astype(o_ref.dtype)


def _pack_params(params, obs_size):
    """Zero-pad every layer to lane-dense (…,128) and pack into two slabs.

    Padded weight rows/cols and bias entries are ZERO (not base_inhibit) so the
    padded columns are exactly 0 through every ReLU and contribute nothing.
    """
    obs_pad = _round_up(max(obs_size, 1), 8)

    def pad_w(w, rows):
        out = jnp.zeros((rows, PAD), jnp.float32)
        return out.at[:w.shape[0], :w.shape[1]].set(w.astype(jnp.float32))

    w_packed = jnp.concatenate(
        [pad_w(params["w1"], obs_pad),
         pad_w(params["w2"], PAD),
         pad_w(params["w3"], PAD),
         pad_w(params["w4"], PAD)], axis=0)

    b_packed = jnp.zeros((8, PAD), jnp.float32)
    for i in range(1, 5):
        b = params[f"b{i}"].astype(jnp.float32)
        b_packed = b_packed.at[i - 1, :b.shape[1]].set(b[0])
    return w_packed, b_packed, obs_pad


def actor_net_forward(x, params, min_val_final, max_val_final):
    """Fused forward pass of ActorNet in one Pallas kernel.

    x: (batch, obs_size) float32
    params: dict with w1..w4 stored as (in, out) and b1..b4 as (1, out)
    """
    batch, obs_size = x.shape
    act_size = params["w4"].shape[1]

    # Pack / pad parameters (cheap; hoist out of the hot path in real use).
    w_packed, b_packed, obs_pad = _pack_params(params, obs_size)

    # Batch tiling: biggest tile that divides the (padded) batch, capped.
    tile_b = min(MAX_TILE_B, _round_up(batch, 8))
    batch_pad = _round_up(batch, tile_b)
    num_tiles = batch_pad // tile_b

    # Zero-pad x to (batch_pad, obs_pad); padded rows/cols are sliced off later.
    x_pad = jnp.zeros((batch_pad, obs_pad), jnp.float32)
    x_pad = x_pad.at[:batch, :obs_size].set(x.astype(jnp.float32))

    # Hardtanh bounds as SMEM scalars (no recompile per clip range).
    bounds = jnp.array([[min_val_final, max_val_final]], jnp.float32)

    w_rows = obs_pad + 3 * PAD
    flops = 2 * batch_pad * (obs_pad * PAD + 3 * PAD * PAD)
    bytes_accessed = 4 * (batch_pad * obs_pad + w_rows * PAD + 8 * PAD
                          + batch_pad * PAD) + 8

    kernel = functools.partial(_actor_kernel, obs_pad=obs_pad)

    out_pad = pl.pallas_call(
        kernel,
        out_shape=jax.ShapeDtypeStruct((batch_pad, PAD), jnp.float32),
        grid=(num_tiles,),
        in_specs=[
            # Hardtanh bounds in SMEM.
            pl.BlockSpec((1, 2), lambda i: (0, 0),
                         memory_space=pltpu.MemorySpace.SMEM),
            # Activations: one batch tile per grid step (pipelined).
            pl.BlockSpec((tile_b, obs_pad), lambda i: (i, 0)),
            # Packed weights / biases: VMEM-resident across the whole grid.
            pl.BlockSpec((w_rows, PAD), lambda i: (0, 0)),
            pl.BlockSpec((8, PAD), lambda i: (0, 0)),
        ],
        out_specs=pl.BlockSpec((tile_b, PAD), lambda i: (i, 0)),
        compiler_params=pltpu.CompilerParams(
            dimension_semantics=("parallel",)),
        cost_estimate=pl.CostEstimate(
            flops=flops, transcendentals=0, bytes_accessed=bytes_accessed),
    )(bounds, x_pad, w_packed, b_packed)

    # Slice the lane-dense slab back to the logical output shape.
    return out_pad[:batch, :act_size]


def init_actor_params(key, obs_size, act_size, base_inhibit):
    """Deterministic init matching nn.Linear defaults for weights; biases are
    filled with `base_inhibit` as in ActorNet.init_weights."""
    dims = [(obs_size, HIDDEN1), (HIDDEN1, HIDDEN2),
            (HIDDEN2, HIDDEN2), (HIDDEN2, act_size)]
    params = {}
    keys = jax.random.split(key, len(dims))
    for i, ((fan_in, fan_out), k) in enumerate(zip(dims, keys), start=1):
        bound = 1.0 / jnp.sqrt(jnp.float32(fan_in))
        # weight stored as (in, out) == PyTorch (out, in) transposed
        params[f"w{i}"] = jax.random.uniform(
            k, (fan_in, fan_out), jnp.float32, minval=-bound, maxval=bound)
        params[f"b{i}"] = jnp.full((1, fan_out), base_inhibit, jnp.float32)
    return params


def actor_net_reference(x, params, min_val_final, max_val_final):
    """Pure-JAX reference for correctness check."""
    h = jnp.maximum(x @ params["w1"] + params["b1"], 0.0)
    h = jnp.maximum(h @ params["w2"] + params["b2"], 0.0)
    h = jnp.maximum(h @ params["w3"] + params["b3"], 0.0)
    y = h @ params["w4"] + params["b4"]
    return jnp.clip(y, min_val_final, max_val_final)


if __name__ == "__main__":
    # Small shapes consistent with the module's forward.
    batch = 2
    obs_size = 8
    act_size = 4
    base_inhibit = -0.5     # bias_val in init_weights
    min_val_final = -1.0    # Hardtanh lower bound
    max_val_final = 1.0     # Hardtanh upper bound

    key = jax.random.PRNGKey(0)
    k_params, k_x = jax.random.split(key)
    params = init_actor_params(k_params, obs_size, act_size, base_inhibit)
    x = jax.random.normal(k_x, (batch, obs_size), jnp.float32)

    out = actor_net_forward(x, params, min_val_final, max_val_final)
    out = jax.block_until_ready(out)

    ref = actor_net_reference(x, params, min_val_final, max_val_final)
    assert out.shape == (batch, act_size)
    assert jnp.allclose(out, ref, atol=1e-5, rtol=1e-5)

    print("KERNEL_OK")
</pallas_src>

<mosaic_0001>
module attributes {stable_mosaic.version = 11 : i64} {
  func.func @_actor_kernel(%arg0: i32, %arg1: memref<1x2xf32, #tpu.memory_space<smem>>, %arg2: memref<8x8xf32, #tpu.memory_space<vmem>>, %arg3: memref<392x128xf32, #tpu.memory_space<vmem>>, %arg4: memref<8x128xf32, #tpu.memory_space<vmem>>, %arg5: memref<8x128xf32, #tpu.memory_space<vmem>>) attributes {dimension_semantics = [#tpu.dimension_semantics<parallel>], iteration_bounds = array<i64: 1>, scalar_prefetch = 0 : i64, scratch_operands = 0 : i64, tpu.core_type = #tpu.core_type<tc>, window_params = [{transform_indices = @transform_0, window_bounds = array<i64: 1, 2>}, {transform_indices = @transform_1, window_bounds = array<i64: 8, 8>}, {pipeline_mode = #tpu.pipeline_mode<synchronous>, transform_indices = @transform_2, window_bounds = array<i64: 392, 128>}, {pipeline_mode = #tpu.pipeline_mode<synchronous>, transform_indices = @transform_3, window_bounds = array<i64: 8, 128>}, {transform_indices = @transform_4, window_bounds = array<i64: 8, 128>}]} {
    %c0 = arith.constant 0 : index
    %c0_0 = arith.constant 0 : index
    %0 = memref.load %arg1[%c0, %c0_0] : memref<1x2xf32, #tpu.memory_space<smem>>
    %c0_1 = arith.constant 0 : index
    %c1 = arith.constant 1 : index
    %1 = memref.load %arg1[%c0_1, %c1] : memref<1x2xf32, #tpu.memory_space<smem>>
    %c0_2 = arith.constant 0 : index
    %c0_3 = arith.constant 0 : index
    %2 = vector.load %arg2[%c0_2, %c0_3] : memref<8x8xf32, #tpu.memory_space<vmem>>, vector<8x8xf32>
    %c0_4 = arith.constant 0 : index
    %c0_5 = arith.constant 0 : index
    %3 = vector.load %arg3[%c0_4, %c0_5] : memref<392x128xf32, #tpu.memory_space<vmem>>, vector<8x128xf32>
    %c8 = arith.constant 8 : index
    %c0_6 = arith.constant 0 : index
    %4 = vector.load %arg3[%c8, %c0_6] : memref<392x128xf32, #tpu.memory_space<vmem>>, vector<128x128xf32>
    %c136 = arith.constant 136 : index
    %c0_7 = arith.constant 0 : index
    %5 = vector.load %arg3[%c136, %c0_7] : memref<392x128xf32, #tpu.memory_space<vmem>>, vector<128x128xf32>
    %c264 = arith.constant 264 : index
    %c0_8 = arith.constant 0 : index
    %6 = vector.load %arg3[%c264, %c0_8] : memref<392x128xf32, #tpu.memory_space<vmem>>, vector<128x128xf32>
    %cst = arith.constant dense<0.000000e+00> : vector<8x128xf32>
    %7 = tpu.matmul %2, %3, %cst {dimension_numbers = #tpu.dot_dimension_numbers<[1], [0], [0], [1], [0, 0, 1, 1], [], []>} : vector<8x8xf32>, vector<8x128xf32>, vector<8x128xf32> -> vector<8x128xf32>
    %c0_9 = arith.constant 0 : index
    %c0_10 = arith.constant 0 : index
    %8 = vector.load %arg4[%c0_9, %c0_10] : memref<8x128xf32, #tpu.memory_space<vmem>>, vector<1x128xf32>
    %9 = vector.broadcast %8 : vector<1x128xf32> to vector<8x128xf32>
    %10 = arith.addf %7, %9 : vector<8x128xf32>
    %cst_11 = arith.constant 0.000000e+00 : f32
    %11 = vector.broadcast %cst_11 : f32 to vector<8x128xf32>
    %12 = arith.maximumf %10, %11 : vector<8x128xf32>
    %cst_12 = arith.constant dense<0.000000e+00> : vector<8x128xf32>
    %13 = tpu.matmul %12, %4, %cst_12 {dimension_numbers = #tpu.dot_dimension_numbers<[1], [0], [0], [1], [0, 0, 1, 1], [], []>} : vector<8x128xf32>, vector<128x128xf32>, vector<8x128xf32> -> vector<8x128xf32>
    %c1_13 = arith.constant 1 : index
    %c0_14 = arith.constant 0 : index
    %14 = vector.load %arg4[%c1_13, %c0_14] : memref<8x128xf32, #tpu.memory_space<vmem>>, vector<1x128xf32>
    %15 = vector.broadcast %14 : vector<1x128xf32> to vector<8x128xf32>
    %16 = arith.addf %13, %15 : vector<8x128xf32>
    %cst_15 = arith.constant 0.000000e+00 : f32
    %17 = vector.broadcast %cst_15 : f32 to vector<8x128xf32>
    %18 = arith.maximumf %16, %17 : vector<8x128xf32>
    %cst_16 = arith.constant dense<0.000000e+00> : vector<8x128xf32>
    %19 = tpu.matmul %18, %5, %cst_16 {dimension_numbers = #tpu.dot_dimension_numbers<[1], [0], [0], [1], [0, 0, 1, 1], [], []>} : vector<8x128xf32>, vector<128x128xf32>, vector<8x128xf32> -> vector<8x128xf32>
    %c2 = arith.constant 2 : index
    %c0_17 = arith.constant 0 : index
    %20 = vector.load %arg4[%c2, %c0_17] : memref<8x128xf32, #tpu.memory_space<vmem>>, vector<1x128xf32>
    %21 = vector.broadcast %20 : vector<1x128xf32> to vector<8x128xf32>
    %22 = arith.addf %19, %21 : vector<8x128xf32>
    %cst_18 = arith.constant 0.000000e+00 : f32
    %23 = vector.broadcast %cst_18 : f32 to vector<8x128xf32>
    %24 = arith.maximumf %22, %23 : vector<8x128xf32>
    %cst_19 = arith.constant dense<0.000000e+00> : vector<8x128xf32>
    %25 = tpu.matmul %24, %6, %cst_19 {dimension_numbers = #tpu.dot_dimension_numbers<[1], [0], [0], [1], [0, 0, 1, 1], [], []>} : vector<8x128xf32>, vector<128x128xf32>, vector<8x128xf32> -> vector<8x128xf32>
    %c3 = arith.constant 3 : index
    %c0_20 = arith.constant 0 : index
    %26 = vector.load %arg4[%c3, %c0_20] : memref<8x128xf32, #tpu.memory_space<vmem>>, vector<1x128xf32>
    %27 = vector.broadcast %26 : vector<1x128xf32> to vector<8x128xf32>
    %28 = arith.addf %25, %27 : vector<8x128xf32>
    %29 = vector.broadcast %0 : f32 to vector<8x128xf32>
    %30 = arith.maximumf %29, %28 : vector<8x128xf32>
    %31 = vector.broadcast %1 : f32 to vector<8x128xf32>
    %32 = arith.minimumf %31, %30 : vector<8x128xf32>
    %c0_21 = arith.constant 0 : index
    %c0_22 = arith.constant 0 : index
    %33 = vector.load %arg5[%c0_21, %c0_22] : memref<8x128xf32, #tpu.memory_space<vmem>>, vector<8x128xf32>
    tpu.vector_store %arg5[%c0_21, %c0_22], %32 {strides = array<i32>} : memref<8x128xf32, #tpu.memory_space<vmem>>, vector<8x128xf32>,
    return
  }
  func.func @transform_0(%arg0: i32) -> (i32, i32) {
    %c0_i32 = arith.constant 0 : i32
    %c0_i32_0 = arith.constant 0 : i32
    %c0_i32_1 = arith.constant 0 : i32
    return %c0_i32, %c0_i32_0 : i32, i32
  }
  func.func @transform_1(%arg0: i32) -> (i32, i32) {
    %c0_i32 = arith.constant 0 : i32
    %c0_i32_0 = arith.constant 0 : i32
    return %arg0, %c0_i32 : i32, i32
  }
  func.func @transform_2(%arg0: i32) -> (i32, i32) {
    %c0_i32 = arith.constant 0 : i32
    %c0_i32_0 = arith.constant 0 : i32
    %c0_i32_1 = arith.constant 0 : i32
    return %c0_i32, %c0_i32_0 : i32, i32
  }
  func.func @transform_3(%arg0: i32) -> (i32, i32) {
    %c0_i32 = arith.constant 0 : i32
    %c0_i32_0 = arith.constant 0 : i32
    %c0_i32_1 = arith.constant 0 : i32
    return %c0_i32, %c0_i32_0 : i32, i32
  }
  func.func @transform_4(%arg0: i32) -> (i32, i32) {
    %c0_i32 = arith.constant 0 : i32
    %c0_i32_0 = arith.constant 0 : i32
    return %arg0, %c0_i32 : i32, i32
  }
}

</mosaic_0001>

<llo_original>
// kernel: tpu_custom_call.1
$region0: #{tpu_custom_call.1}
  #allocation0 [shape = 'u32[]', space=smem, size = 0x4, offset = 0x4, fixed_abs, tag = 'smem constant byte address 0x4 - core index']
  #allocation1 [shape = 'u32[144,128]{1,0:T(1,128)}', space=vmem, size = 0x12000, scoped, tag = 'internal scratch']
  %s0 = inlined_call_operand.hbm [shape: f32[1,2], index: 0, kind: input, shape index: {}]
  %s1 = inlined_call_operand.hbm [shape: f32[8,8], index: 1, kind: input, shape index: {}]
  %s2 = inlined_call_operand.hbm [shape: f32[392,128], index: 2, kind: input, shape index: {}]
  %s3 = inlined_call_operand.vmem [shape: f32[8,128], index: 3, kind: input, shape index: {}]
  %s4 = inlined_call_operand.hbm [shape: f32[8,128], index: 4, kind: output, shape index: {}]
  %s5 = sld [smem:[#allocation0]]
  $region38: #{tpu_custom_call.1} parent=0
    _
  %s7 = ssub.s32 1, %s5
  %s8 = scalar_select 0, %s7, %s5
  $region1: #{tpu_custom_call.1} parent=0
    #allocation2 [shape = 'u8[512]{0}', space=smem, size = 0x200, scoped, tag = 'input window, operand 0, single buffered']
    #allocation3 [shape = 's32[1]{0}', space=sflag, size = 0x4, scoped, tag = 'scoped memory for tpu_custom_call.1']
    #allocation4 [shape = 's32[1]{0}', space=sflag, size = 0x4, scoped, tag = 'scoped memory for tpu_custom_call.1']
    #allocation5 [shape = 's32[1]{0}', space=sflag, size = 0x4, scoped, tag = 'scoped memory for tpu_custom_call.1']
    #allocation6 [shape = 'u8[4096]{0}', space=vmem, size = 0x1000, scoped, tag = 'input window, operand 1, single buffered']
    #allocation7 [shape = 'u8[200704]{0}', space=vmem, size = 0x31000, scoped, tag = 'input window, operand 2, single buffered']
    #allocation8 [shape = 's32[1]{0}', space=sflag, size = 0x4, scoped, tag = 'scoped memory for tpu_custom_call.1']
    #allocation9 [shape = 'u8[4096]{0}', space=vmem, size = 0x1000, scoped, tag = 'output window, operand 0, single buffered']
    %9 = vsyncpa [#allocation5], 0
    %10 = vsyncpa [#allocation3], 0
    %11 = vsyncpa [#allocation8], 0
    %12 = vsyncpa [#allocation4], 0
    // Predicated region
    $region2: #{tpu_custom_call.1} parent=1 // pred_check
      _
    $region3: #{tpu_custom_call.1} parent=1 // pred_check_branch
      %14 = sbr.rel (0) target = $region5
    $region4: #{tpu_custom_call.1} parent=1 // pred_region
      %s16 = ssub.s32 16, 16
      %17 = vsyncadd [#allocation5], %s16
      %20 = dma.hbm_to_smem %s0, 16, [#allocation2], [#allocation5]
    $region5: #{tpu_custom_call.1} parent=1 // pred_fallthru
      _
    // Predicated region
    $region6: #{tpu_custom_call.1} parent=1 // pred_check
      _
    $region7: #{tpu_custom_call.1} parent=1 // pred_check_branch
      %22 = sbr.rel (0) target = $region9
    $region8: #{tpu_custom_call.1} parent=1 // pred_region
      %s24 = ssub.s32 128, 128
      %25 = vsyncadd [#allocation3], %s24
      %s27 = sshll.u32 [#allocation6], 4
      %s28 = int_to_ptr.vmem [resolvable:$true] %s27
      %30 = dma.hbm_to_vmem [thread:$0]  %s1, 128, %s28, [#allocation3]
    $region9: #{tpu_custom_call.1} parent=1 // pred_fallthru
      _
    // Predicated region
    $region10: #{tpu_custom_call.1} parent=1 // pred_check
      _
    $region11: #{tpu_custom_call.1} parent=1 // pred_check_branch
      %32 = sbr.rel (0) target = $region13
    $region12: #{tpu_custom_call.1} parent=1 // pred_region
      %s34 = ssub.s32 6272, 6272
      %35 = vsyncadd [#allocation8], %s34
      %s36 = sshll.u32 [#allocation7], 4
      %s37 = int_to_ptr.vmem [resolvable:$true] %s36
      %42 = dma.hbm_to_vmem [thread:$0]  %s2, 6272, %s37, [#allocation8], 128, 128, 8
    $region13: #{tpu_custom_call.1} parent=1 // pred_fallthru
      _
    // Predicated region
    $region14: #{tpu_custom_call.1} parent=1 // pred_check
      _
    $region15: #{tpu_custom_call.1} parent=1 // pred_check_branch
      %44 = sbr.rel (0) target = $region17
    $region16: #{tpu_custom_call.1} parent=1 // pred_region
      _
    $region17: #{tpu_custom_call.1} parent=1 // pred_fallthru
      _
    // Predicated region
    $region18: #{tpu_custom_call.1} parent=1 // pred_check
      _
    $region19: #{tpu_custom_call.1} parent=1 // pred_check_branch
      %46 = sbr.rel (0) target = $region21
    $region20: #{tpu_custom_call.1} parent=1 // pred_region
      %47 = dma.done [#allocation5], 16
    $region21: #{tpu_custom_call.1} parent=1 // pred_fallthru
      _
    // Predicated region
    $region22: #{tpu_custom_call.1} parent=1 // pred_check
      _
    $region23: #{tpu_custom_call.1} parent=1 // pred_check_branch
      %49 = sbr.rel (0) target = $region25
    $region24: #{tpu_custom_call.1} parent=1 // pred_region
      %50 = dma.done [#allocation3], 128
    $region25: #{tpu_custom_call.1} parent=1 // pred_fallthru
      _
    // Predicated region
    $region26: #{tpu_custom_call.1} parent=1 // pred_check
      _
    $region27: #{tpu_custom_call.1} parent=1 // pred_check_branch
      %52 = sbr.rel (0) target = $region29
    $region28: #{tpu_custom_call.1} parent=1 // pred_region
      %53 = dma.done [#allocation8], 6272
    $region29: #{tpu_custom_call.1} parent=1 // pred_fallthru
      _
    %54 = sfence
    %s55 = sld [smem:[#allocation2]]
    %s56 = sld [smem:[#allocation2 + $0x1]]
    %v57 = vld [vmem:[#allocation6] sm:$0xff]
    %v58 = vld [vmem:[#allocation7] sm:$0xff]
    %v59 = vld [vmem:[#allocation7 + $0x8] sm:$0xff]
    %v60 = vld [vmem:[#allocation7 + $0x10] sm:$0xff]
    %v61 = vld [vmem:[#allocation7 + $0x18] sm:$0xff]
    %v62 = vld [vmem:[#allocation7 + $0x20] sm:$0xff]
    %v63 = vld [vmem:[#allocation7 + $0x28] sm:$0xff]
    %v64 = vld [vmem:[#allocation7 + $0x30] sm:$0xff]
    %v65 = vld [vmem:[#allocation7 + $0x38] sm:$0xff]
    %v66 = vld [vmem:[#allocation7 + $0x40] sm:$0xff]
    %v67 = vld [vmem:[#allocation7 + $0x48] sm:$0xff]
    %v68 = vld [vmem:[#allocation7 + $0x50] sm:$0xff]
    %v69 = vld [vmem:[#allocation7 + $0x58] sm:$0xff]
    %v70 = vld [vmem:[#allocation7 + $0x60] sm:$0xff]
    %v71 = vld [vmem:[#allocation7 + $0x68] sm:$0xff]
    %v72 = vld [vmem:[#allocation7 + $0x70] sm:$0xff]
    %v73 = vld [vmem:[#allocation7 + $0x78] sm:$0xff]
    %v74 = vld [vmem:[#allocation7 + $0x80] sm:$0xff]
    %v75 = vld [vmem:[#allocation7 + $0x88] sm:$0xff]
    %v76 = vld [vmem:[#allocation7 + $0x90] sm:$0xff]
    %v77 = vld [vmem:[#allocation7 + $0x98] sm:$0xff]
    %v78 = vld [vmem:[#allocation7 + $0xa0] sm:$0xff]
    %v79 = vld [vmem:[#allocation7 + $0xa8] sm:$0xff]
    %v80 = vld [vmem:[#allocation7 + $0xb0] sm:$0xff]
    %v81 = vld [vmem:[#allocation7 + $0xb8] sm:$0xff]
    %v82 = vld [vmem:[#allocation7 + $0xc0] sm:$0xff]
    %v83 = vld [vmem:[#allocation7 + $0xc8] sm:$0xff]
    %v84 = vld [vmem:[#allocation7 + $0xd0] sm:$0xff]
    %v85 = vld [vmem:[#allocation7 + $0xd8] sm:$0xff]
    %v86 = vld [vmem:[#allocation7 + $0xe0] sm:$0xff]
    %v87 = vld [vmem:[#allocation7 + $0xe8] sm:$0xff]
    %v88 = vld [vmem:[#allocation7 + $0xf0] sm:$0xff]
    %v89 = vld [vmem:[#allocation7 + $0xf8] sm:$0xff]
    %v90 = vld [vmem:[#allocation7 + $0x100] sm:$0xff]
    %v91 = vld [vmem:[#allocation7 + $0x108] sm:$0xff]
    %v92 = vld [vmem:[#allocation7 + $0x110] sm:$0xff]
    %v93 = vld [vmem:[#allocation7 + $0x118] sm:$0xff]
    %v94 = vld [vmem:[#allocation7 + $0x120] sm:$0xff]
    %v95 = vld [vmem:[#allocation7 + $0x128] sm:$0xff]
    %v96 = vld [vmem:[#allocation7 + $0x130] sm:$0xff]
    %v97 = vld [vmem:[#allocation7 + $0x138] sm:$0xff]
    %v98 = vld [vmem:[#allocation7 + $0x140] sm:$0xff]
    %v99 = vld [vmem:[#allocation7 + $0x148] sm:$0xff]
    %v100 = vld [vmem:[#allocation7 + $0x150] sm:$0xff]
    %v101 = vld [vmem:[#allocation7 + $0x158] sm:$0xff]
    %v102 = vld [vmem:[#allocation7 + $0x160] sm:$0xff]
    %v103 = vld [vmem:[#allocation7 + $0x168] sm:$0xff]
    %v104 = vld [vmem:[#allocation7 + $0x170] sm:$0xff]
    %v105 = vld [vmem:[#allocation7 + $0x178] sm:$0xff]
    %v106 = vld [vmem:[#allocation7 + $0x180] sm:$0xff]
    %v107 = vld [vmem:[%s3] sm:$0x1]
    %v108 = vlaneseq
    %v109 = vshrl.u32 %v108, 7
    %v110 = vsub.s32 0, %v109
    %v111 = vrot.slane %v107, %v110
    %vm112 = vcmask 64512
    %v114 = vsel %vm112, %v57, 0
    %116 = vmatprep.subr.mxu0 0.0
    %117 = vmatpush1.msra.mxu0 %v58
    %118 = vmatprep.subr.mxu0 0.0
    %119 = vmatpush1.msra.mxu0 0.0
    %120 = vmatprep.subr.mxu0 0.0
    %121 = vmatpush1.msra.mxu0 0.0
    %122 = vmatprep.subr.mxu0 0.0
    %123 = vmatpush1.msra.mxu0 0.0
    %124 = vmatprep.subr.mxu0 0.0
    %125 = vmatpush1.msra.mxu0 0.0
    %126 = vmatprep.subr.mxu0 0.0
    %127 = vmatpush1.msra.mxu0 0.0
    %128 = vmatprep.subr.mxu0 0.0
    %129 = vmatpush1.msra.mxu0 0.0
    %130 = vmatprep.subr.mxu0 0.0
    %131 = vmatpush1.msra.mxu0 0.0
    %132 = vmatprep.subr.mxu0 0.0
    %133 = vmatpush1.msra.mxu0 0.0
    %134 = vmatprep.subr.mxu0 0.0
    %135 = vmatpush1.msra.mxu0 0.0
    %136 = vmatprep.subr.mxu0 0.0
    %137 = vmatpush1.msra.mxu0 0.0
    %138 = vmatprep.subr.mxu0 0.0
    %139 = vmatpush1.msra.mxu0 0.0
    %140 = vmatprep.subr.mxu0 0.0
    %141 = vmatpush1.msra.mxu0 0.0
    %142 = vmatprep.subr.mxu0 0.0
    %143 = vmatpush1.msra.mxu0 0.0
    %144 = vmatprep.subr.mxu0 0.0
    %145 = vmatpush1.msra.mxu0 0.0
    %146 = vmatprep.subr.mxu0 0.0
    %147 = vmatpush1.msra.mxu0 0.0
    %148 = vmatprep.subr.mxu0 0.0
    %149 = vmatpush1.msra.mxu0 0.0
    %150 = vmatprep.subr.mxu0 0.0
    %151 = vmatpush1.msra.mxu0 0.0
    %152 = vmatprep.subr.mxu0 0.0
    %153 = vmatpush1.msra.mxu0 0.0
    %154 = vmatprep.subr.mxu0 0.0
    %155 = vmatpush1.msra.mxu0 0.0
    %156 = vmatprep.subr.mxu0 0.0
    %157 = vmatpush1.msra.mxu0 0.0
    %158 = vmatprep.subr.mxu0 0.0
    %159 = vmatpush1.msra.mxu0 0.0
    %160 = vmatprep.subr.mxu0 0.0
    %161 = vmatpush1.msra.mxu0 0.0
    %162 = vmatprep.subr.mxu0 0.0
    %163 = vmatpush1.msra.mxu0 0.0
    %164 = vmatprep.subr.mxu0 0.0
    %165 = vmatpush1.msra.mxu0 0.0
    %166 = vmatprep.subr.mxu0 0.0
    %167 = vmatpush1.msra.mxu0 0.0
    %168 = vmatprep.subr.mxu0 0.0
    %169 = vmatpush1.msra.mxu0 0.0
    %170 = vmatprep.subr.mxu0 0.0
    %171 = vmatpush1.msra.mxu0 0.0
    %172 = vmatprep.subr.mxu0 0.0
    %173 = vmatpush1.msra.mxu0 0.0
    %174 = vmatprep.subr.mxu0 0.0
    %175 = vmatpush1.msra.mxu0 0.0
    %176 = vmatprep.subr.mxu0 0.0
    %177 = vmatpush1.msra.mxu0 0.0
    %178 = vmatprep.subr.mxu0 0.0
    %179 = vmatpush1.msra.mxu0 0.0
    %180 = vmatprep.mubr.f32.mxu0 0.0
    %181 = vmatmul.mubr.f32.gmra.mrb[0].mxu0 %v114
    %v182 = vpop.f32.mrb[0].mxu0
    %v183 = vadd.f32 %v111, %v182
    %v184 = vpop.f32.mrb[0].mxu0
    %185 = vdwg.mxu0
    %v186 = vmax.f32 %v183, 0.0
    %v187 = vld [vmem:[%s3 + $0x1] sm:$0x1]
    %v188 = vlaneseq
    %v189 = vshrl.u32 %v188, 7
    %v190 = vsub.s32 0, %v189
    %v191 = vrot.slane %v187, %v190
    %192 = vmatprep.subr.mxu0 0.0
    %193 = vmatpush1.msra.mxu0 %v59
    %194 = vmatprep.subr.mxu0 0.0
    %195 = vmatpush1.msra.mxu0 %v60
    %196 = vmatprep.subr.mxu0 0.0
    %197 = vmatpush1.msra.mxu0 %v61
    %198 = vmatprep.subr.mxu0 0.0
    %199 = vmatpush1.msra.mxu0 %v62
    %200 = vmatprep.subr.mxu0 0.0
    %201 = vmatpush1.msra.mxu0 %v63
    %202 = vmatprep.subr.mxu0 0.0
    %203 = vmatpush1.msra.mxu0 %v64
    %204 = vmatprep.subr.mxu0 0.0
    %205 = vmatpush1.msra.mxu0 %v65
    %206 = vmatprep.subr.mxu0 0.0
    %207 = vmatpush1.msra.mxu0 %v66
    %208 = vmatprep.subr.mxu0 0.0
    %209 = vmatpush1.msra.mxu0 %v67
    %210 = vmatprep.subr.mxu0 0.0
    %211 = vmatpush1.msra.mxu0 %v68
    %212 = vmatprep.subr.mxu0 0.0
    %213 = vmatpush1.msra.mxu0 %v69
    %214 = vmatprep.subr.mxu0 0.0
    %215 = vmatpush1.msra.mxu0 %v70
    %216 = vmatprep.subr.mxu0 0.0
    %217 = vmatpush1.msra.mxu0 %v71
    %218 = vmatprep.subr.mxu0 0.0
    %219 = vmatpush1.msra.mxu0 %v72
    %220 = vmatprep.subr.mxu0 0.0
    %221 = vmatpush1.msra.mxu0 %v73
    %222 = vmatprep.subr.mxu0 0.0
    %223 = vmatpush1.msra.mxu0 %v74
    %224 = vmatprep.subr.mxu0 0.0
    %225 = vmatpush1.msra.mxu0 0.0
    %226 = vmatprep.subr.mxu0 0.0
    %227 = vmatpush1.msra.mxu0 0.0
    %228 = vmatprep.subr.mxu0 0.0
    %229 = vmatpush1.msra.mxu0 0.0
    %230 = vmatprep.subr.mxu0 0.0
    %231 = vmatpush1.msra.mxu0 0.0
    %232 = vmatprep.subr.mxu0 0.0
    %233 = vmatpush1.msra.mxu0 0.0
    %234 = vmatprep.subr.mxu0 0.0
    %235 = vmatpush1.msra.mxu0 0.0
    %236 = vmatprep.subr.mxu0 0.0
    %237 = vmatpush1.msra.mxu0 0.0
    %238 = vmatprep.subr.mxu0 0.0
    %239 = vmatpush1.msra.mxu0 0.0
    %240 = vmatprep.subr.mxu0 0.0
    %241 = vmatpush1.msra.mxu0 0.0
    %242 = vmatprep.subr.mxu0 0.0
    %243 = vmatpush1.msra.mxu0 0.0
    %244 = vmatprep.subr.mxu0 0.0
    %245 = vmatpush1.msra.mxu0 0.0
    %246 = vmatprep.subr.mxu0 0.0
    %247 = vmatpush1.msra.mxu0 0.0
    %248 = vmatprep.subr.mxu0 0.0
    %249 = vmatpush1.msra.mxu0 0.0
    %250 = vmatprep.subr.mxu0 0.0
    %251 = vmatpush1.msra.mxu0 0.0
    %252 = vmatprep.subr.mxu0 0.0
    %253 = vmatpush1.msra.mxu0 0.0
    %254 = vmatprep.subr.mxu0 0.0
    %255 = vmatpush1.msra.mxu0 0.0
    %256 = vmatprep.mubr.f32.mxu0 0.0
    %257 = vmatmul.mubr.f32.gmra.mrb[0].mxu0 %v186
    %v258 = vpop.f32.mrb[0].mxu0
    %v259 = vadd.f32 %v191, %v258
    %v260 = vpop.f32.mrb[0].mxu0
    %261 = vdwg.mxu0
    %v262 = vmax.f32 %v259, 0.0
    %v263 = vld [vmem:[%s3 + $0x2] sm:$0x1]
    %v264 = vlaneseq
    %v265 = vshrl.u32 %v264, 7
    %v266 = vsub.s32 0, %v265
    %v267 = vrot.slane %v263, %v266
    %268 = vmatprep.subr.mxu0 0.0
    %269 = vmatpush1.msra.mxu0 %v75
    %270 = vmatprep.subr.mxu0 0.0
    %271 = vmatpush1.msra.mxu0 %v76
    %272 = vmatprep.subr.mxu0 0.0
    %273 = vmatpush1.msra.mxu0 %v77
    %274 = vmatprep.subr.mxu0 0.0
    %275 = vmatpush1.msra.mxu0 %v78
    %276 = vmatprep.subr.mxu0 0.0
    %277 = vmatpush1.msra.mxu0 %v79
    %278 = vmatprep.subr.mxu0 0.0
    %279 = vmatpush1.msra.mxu0 %v80
    %280 = vmatprep.subr.mxu0 0.0
    %281 = vmatpush1.msra.mxu0 %v81
    %282 = vmatprep.subr.mxu0 0.0
    %283 = vmatpush1.msra.mxu0 %v82
    %284 = vmatprep.subr.mxu0 0.0
    %285 = vmatpush1.msra.mxu0 %v83
    %286 = vmatprep.subr.mxu0 0.0
    %287 = vmatpush1.msra.mxu0 %v84
    %288 = vmatprep.subr.mxu0 0.0
    %289 = vmatpush1.msra.mxu0 %v85
    %290 = vmatprep.subr.mxu0 0.0
    %291 = vmatpush1.msra.mxu0 %v86
    %292 = vmatprep.subr.mxu0 0.0
    %293 = vmatpush1.msra.mxu0 %v87
    %294 = vmatprep.subr.mxu0 0.0
    %295 = vmatpush1.msra.mxu0 %v88
    %296 = vmatprep.subr.mxu0 0.0
    %297 = vmatpush1.msra.mxu0 %v89
    %298 = vmatprep.subr.mxu0 0.0
    %299 = vmatpush1.msra.mxu0 %v90
    %300 = vmatprep.subr.mxu0 0.0
    %301 = vmatpush1.msra.mxu0 0.0
    %302 = vmatprep.subr.mxu0 0.0
    %303 = vmatpush1.msra.mxu0 0.0
    %304 = vmatprep.subr.mxu0 0.0
    %305 = vmatpush1.msra.mxu0 0.0
    %306 = vmatprep.subr.mxu0 0.0
    %307 = vmatpush1.msra.mxu0 0.0
    %308 = vmatprep.subr.mxu0 0.0
    %309 = vmatpush1.msra.mxu0 0.0
    %310 = vmatprep.subr.mxu0 0.0
    %311 = vmatpush1.msra.mxu0 0.0
    %312 = vmatprep.subr.mxu0 0.0
    %313 = vmatpush1.msra.mxu0 0.0
    %314 = vmatprep.subr.mxu0 0.0
    %315 = vmatpush1.msra.mxu0 0.0
    %316 = vmatprep.subr.mxu0 0.0
    %317 = vmatpush1.msra.mxu0 0.0
    %318 = vmatprep.subr.mxu0 0.0
    %319 = vmatpush1.msra.mxu0 0.0
    %320 = vmatprep.subr.mxu0 0.0
    %321 = vmatpush1.msra.mxu0 0.0
    %322 = vmatprep.subr.mxu0 0.0
    %323 = vmatpush1.msra.mxu0 0.0
    %324 = vmatprep.subr.mxu0 0.0
    %325 = vmatpush1.msra.mxu0 0.0
    %326 = vmatprep.subr.mxu0 0.0
    %327 = vmatpush1.msra.mxu0 0.0
    %328 = vmatprep.subr.mxu0 0.0
    %329 = vmatpush1.msra.mxu0 0.0
    %330 = vmatprep.subr.mxu0 0.0
    %331 = vmatpush1.msra.mxu0 0.0
    %332 = vmatprep.mubr.f32.mxu0 0.0
    %333 = vmatmul.mubr.f32.gmra.mrb[0].mxu0 %v262
    %v334 = vpop.f32.mrb[0].mxu0
    %v335 = vadd.f32 %v267, %v334
    %v336 = vpop.f32.mrb[0].mxu0
    %337 = vdwg.mxu0
    %v338 = vmax.f32 %v335, 0.0
    %v339 = vld [vmem:[%s3 + $0x3] sm:$0x1]
    %v340 = vlaneseq
    %v341 = vshrl.u32 %v340, 7
    %v342 = vsub.s32 0, %v341
    %v343 = vrot.slane %v339, %v342
    %344 = vmatprep.subr.mxu0 0.0
    %345 = vmatpush1.msra.mxu0 %v91
    %346 = vmatprep.subr.mxu0 0.0
    %347 = vmatpush1.msra.mxu0 %v92
    %348 = vmatprep.subr.mxu0 0.0
    %349 = vmatpush1.msra.mxu0 %v93
    %350 = vmatprep.subr.mxu0 0.0
    %351 = vmatpush1.msra.mxu0 %v94
    %352 = vmatprep.subr.mxu0 0.0
    %353 = vmatpush1.msra.mxu0 %v95
    %354 = vmatprep.subr.mxu0 0.0
    %355 = vmatpush1.msra.mxu0 %v96
    %356 = vmatprep.subr.mxu0 0.0
    %357 = vmatpush1.msra.mxu0 %v97
    %358 = vmatprep.subr.mxu0 0.0
    %359 = vmatpush1.msra.mxu0 %v98
    %360 = vmatprep.subr.mxu0 0.0
    %361 = vmatpush1.msra.mxu0 %v99
    %362 = vmatprep.subr.mxu0 0.0
    %363 = vmatpush1.msra.mxu0 %v100
    %364 = vmatprep.subr.mxu0 0.0
    %365 = vmatpush1.msra.mxu0 %v101
    %366 = vmatprep.subr.mxu0 0.0
    %367 = vmatpush1.msra.mxu0 %v102
    %368 = vmatprep.subr.mxu0 0.0
    %369 = vmatpush1.msra.mxu0 %v103
    %370 = vmatprep.subr.mxu0 0.0
    %371 = vmatpush1.msra.mxu0 %v104
    %372 = vmatprep.subr.mxu0 0.0
    %373 = vmatpush1.msra.mxu0 %v105
    %374 = vmatprep.subr.mxu0 0.0
    %375 = vmatpush1.msra.mxu0 %v106
    %376 = vmatprep.subr.mxu0 0.0
    %377 = vmatpush1.msra.mxu0 0.0
    %378 = vmatprep.subr.mxu0 0.0
    %379 = vmatpush1.msra.mxu0 0.0
    %380 = vmatprep.subr.mxu0 0.0
    %381 = vmatpush1.msra.mxu0 0.0
    %382 = vmatprep.subr.mxu0 0.0
    %383 = vmatpush1.msra.mxu0 0.0
    %384 = vmatprep.subr.mxu0 0.0
    %385 = vmatpush1.msra.mxu0 0.0
    %386 = vmatprep.subr.mxu0 0.0
    %387 = vmatpush1.msra.mxu0 0.0
    %388 = vmatprep.subr.mxu0 0.0
    %389 = vmatpush1.msra.mxu0 0.0
    %390 = vmatprep.subr.mxu0 0.0
    %391 = vmatpush1.msra.mxu0 0.0
    %392 = vmatprep.subr.mxu0 0.0
    %393 = vmatpush1.msra.mxu0 0.0
    %394 = vmatprep.subr.mxu0 0.0
    %395 = vmatpush1.msra.mxu0 0.0
    %396 = vmatprep.subr.mxu0 0.0
    %397 = vmatpush1.msra.mxu0 0.0
    %398 = vmatprep.subr.mxu0 0.0
    %399 = vmatpush1.msra.mxu0 0.0
    %400 = vmatprep.subr.mxu0 0.0
    %401 = vmatpush1.msra.mxu0 0.0
    %402 = vmatprep.subr.mxu0 0.0
    %403 = vmatpush1.msra.mxu0 0.0
    %404 = vmatprep.subr.mxu0 0.0
    %405 = vmatpush1.msra.mxu0 0.0
    %406 = vmatprep.subr.mxu0 0.0
    %407 = vmatpush1.msra.mxu0 0.0
    %408 = vmatprep.mubr.f32.mxu0 0.0
    %409 = vmatmul.mubr.f32.gmra.mrb[0].mxu0 %v338
    %v410 = vpop.f32.mrb[0].mxu0
    %v411 = vadd.f32 %v343, %v410
    %v412 = vpop.f32.mrb[0].mxu0
    %413 = vdwg.mxu0
    %v414 = vstv %s55
    %v415 = vmax.f32 %v414, %v411
    %v416 = vstv %s56
    %v417 = vmin.f32 %v416, %v415
    %418 = vst [vmem:[#allocation9] sm:$0xff] %v417
    // Predicated region
    $region30: #{tpu_custom_call.1} parent=1 // pred_check
      _
    $region31: #{tpu_custom_call.1} parent=1 // pred_check_branch
      %420 = sbr.rel (0) target = $region33
    $region32: #{tpu_custom_call.1} parent=1 // pred_region
      %s422 = ssub.s32 128, 128
      %423 = vsyncadd [#allocation4], %s422
      %s425 = sshll.u32 [#allocation9], 4
      %s426 = int_to_ptr.vmem [resolvable:$true] %s425
      %428 = dma.vmem_to_hbm [thread:$0]  %s426, 128, %s4, [#allocation4]
    $region33: #{tpu_custom_call.1} parent=1 // pred_fallthru
      _
    // Predicated region
    $region34: #{tpu_custom_call.1} parent=1 // pred_check
      _
    $region35: #{tpu_custom_call.1} parent=1 // pred_check_branch
      %430 = sbr.rel (0) target = $region37
    $region36: #{tpu_custom_call.1} parent=1 // pred_region
      %431 = dma.done [#allocation4], 128
    $region37: #{tpu_custom_call.1} parent=1 // pred_fallthru
      _
    %432 = vsyncpa [#allocation3], 1
    %433 = vsyncpa [#allocation8], 1
    %434 = vsyncpa [#allocation4], 1
    %435 = vsyncpa [#allocation5], 1

</llo_original>
